<compile_context>
chip_gen: v7x
topology: tpu7x:2x2x1
jax: 0.10.0
libtpu: 0.0.40
codegen_flags: <defaults>
</compile_context>

<pallas_src>
import functools
import math

import jax
import jax.numpy as jnp
from jax.experimental import pallas as pl
from jax.experimental.pallas import tpu as pltpu


def channel_attention_kernel(x_ref, w1t_ref, b1_ref, w2t_ref, b2_ref, o_ref):
    """One grid step: `nb` batch elements, all channels, true (unpadded) HW lanes."""
    x = x_ref[...]                                   # (nb, C, HW) f32
    nb, c, hw = x.shape

    # ---- pools (lane-axis reductions over the logical extent) --------------
    avg = jnp.sum(x, axis=-1) * jnp.float32(1.0 / hw)   # (nb, C)  AdaptiveAvgPool2d(1)
    mx = jnp.max(x, axis=-1)                              # (nb, C)  AdaptiveMaxPool2d(1)

    # ---- fused squeeze-excite MLP -------------------------------------------
    # One pass through both 1x1-conv layers serves the avg AND max branch of
    # every batch element in the block (rows stacked).  Weights arrive
    # pre-transposed, so no in-kernel .T.
    pooled = jnp.concatenate([avg, mx], axis=0)      # (2*nb, C)
    h = jnp.dot(pooled, w1t_ref[...], preferred_element_type=jnp.float32) + b1_ref[...]
    h = jnp.maximum(h, 0.0)                          # ReLU (act='relu', norm='noop')
    y = jnp.dot(h, w2t_ref[...], preferred_element_type=jnp.float32)     # (2*nb, C)
    # avg-branch + max-branch; the second-layer bias appears once per branch.
    pre = y[:nb] + y[nb:] + 2.0 * b2_ref[...]        # (nb, C)
    gate = jax.nn.sigmoid(pre)                       # (nb, C)

    # ---- apply ---------------------------------------------------------------
    # Re-read x from the (already resident) VMEM buffer: keeps the pooled value
    # from being live across the MLP and lets the apply pass overlap the tail.
    o_ref[...] = x_ref[...] * gate[:, :, None]


def _hw_info():
    """(VMEM capacity bytes, number of TensorCores sharing the grid)."""
    vmem = 64 << 20                                  # conservative default (v7x)
    try:
        info = pltpu.get_tpu_info()
        vmem = int(getattr(info, "vmem_capacity_bytes", vmem))
    except Exception:
        pass
    n_tc = 1
    try:
        kind = jax.devices()[0].device_kind.lower()
        if "v7" in kind:                             # v7x: 2 TensorCores per chip
            n_tc = 2
    except Exception:
        pass
    return vmem, n_tc


def _choose_batch_block(n, c, hw, itemsize, weight_bytes, vmem_capacity, n_tc):
    """Largest divisor of n whose working set fits a conservative VMEM budget.

    Accounts for ~6 block-sized copies (2 in bufs + 2 out bufs + live value +
    slack).  Blocks are additionally capped at ~8 MiB: the kernel is HBM-bound
    and the roofline is already saturated there.  On 2-TC parts (v7x) prefer a
    step count that is a multiple of the core count so both cores get work; on
    single-TC chips the grid is a serial loop, so just maximize the block.
    """
    per_elem = c * hw * itemsize                     # one batch element, one copy
    block_cap = 8 << 20
    budget = min(vmem_capacity // 2, 48 << 20)       # safe on v7x (64 MiB physical)
    nb_max = max(1, min(block_cap // per_elem,
                        max(1, (budget - weight_bytes) // (6 * per_elem))))
    best = 1
    for cand in range(1, n + 1):
        if n % cand != 0 or cand > nb_max:
            continue
        steps = n // cand
        if n_tc > 1 and n >= n_tc and steps % n_tc != 0:
            continue                                 # keep both v7x TCs fed
        best = cand
    return best


def channel_attention(x_nchw, w1, b1, w2, b2):
    """x: (N,C,H,W) f32; w1: (hid,C); b1: (1,hid); w2: (C,hid); b2: (1,C)."""
    n, c, h, w = x_nchw.shape
    hw = h * w
    hid = w1.shape[0]

    # Lane-dense layout: channels on sublanes, flattened spatial on lanes.
    # No padding: the block's last dim equals the true HW (full array dim).
    x = x_nchw.reshape(n, c, hw)
    w1_t = jnp.transpose(w1)                         # (C, hid) — transposed once, in the wrapper
    w2_t = jnp.transpose(w2)                         # (hid, C)

    itemsize = jnp.dtype(x.dtype).itemsize
    weight_bytes = itemsize * (hid * c + hid + c * hid + c) + (64 << 10)  # + layout-pad slack
    vmem_capacity, n_tc = _hw_info()
    nb = _choose_batch_block(n, c, hw, itemsize, weight_bytes, vmem_capacity, n_tc)

    block_bytes = nb * c * hw * itemsize
    vmem_limit = int(max(32 << 20,
                         min(6 * block_bytes + weight_bytes + (2 << 20),
                             min(vmem_capacity * 3 // 4, 96 << 20))))

    flops = 3 * n * c * hw + 8 * n * hid * c         # pools + apply + tiny MLP
    cost = pl.CostEstimate(
        flops=int(flops),
        transcendentals=int(n * c),                  # sigmoid
        bytes_accessed=int(2 * n * c * hw * itemsize + 2 * weight_bytes),
    )

    out = pl.pallas_call(
        channel_attention_kernel,
        out_shape=jax.ShapeDtypeStruct((n, c, hw), x.dtype),
        grid=(n // nb,),
        in_specs=[
            pl.BlockSpec((nb, c, hw), lambda i: (i, 0, 0)),   # nb batch elems / step
            pl.BlockSpec((c, hid), lambda i: (0, 0)),
            pl.BlockSpec((1, hid), lambda i: (0, 0)),
            pl.BlockSpec((hid, c), lambda i: (0, 0)),
            pl.BlockSpec((1, c), lambda i: (0, 0)),
        ],
        out_specs=pl.BlockSpec((nb, c, hw), lambda i: (i, 0, 0)),
        compiler_params=pltpu.CompilerParams(
            dimension_semantics=("parallel",),
            vmem_limit_bytes=vmem_limit,
        ),
        cost_estimate=cost,
    )(x, w1_t, b1, w2_t, b2)

    return out.reshape(n, c, h, w)


def reference(x, w1, b1, w2, b2):
    # Pure-JAX reference of the PyTorch forward (NCHW).
    avg = jnp.mean(x, axis=(2, 3))                   # (N, C)
    mx = jnp.max(x, axis=(2, 3))                     # (N, C)

    def mlp(v):                                      # v: (N, C)
        hmid = jnp.maximum(v @ w1.T + b1, 0.0)
        return hmid @ w2.T + b2

    gate = jax.nn.sigmoid(mlp(avg) + mlp(mx))        # (N, C)
    return x * gate[:, :, None, None]


if __name__ == "__main__":
    reduction_rate = 0.8

    def run_case(n, c, h, w):
        hid = math.ceil(reduction_rate * c)          # ceil(0.8 * 8) = 7
        key = jax.random.PRNGKey(0)
        kx, k1, k2, k3, k4 = jax.random.split(key, 5)

        x = jax.random.normal(kx, (n, c, h, w), dtype=jnp.float32)
        # Synthetic params; shapes match Conv1x1 weights squeezed of the 1x1 spatial.
        w1 = jax.random.normal(k1, (hid, c), dtype=jnp.float32) * 0.3
        b1 = jax.random.normal(k2, (1, hid), dtype=jnp.float32) * 0.1
        w2 = jax.random.normal(k3, (c, hid), dtype=jnp.float32) * 0.3
        b2 = jax.random.normal(k4, (1, c), dtype=jnp.float32) * 0.1

        out = jax.block_until_ready(channel_attention(x, w1, b1, w2, b2))
        ref = reference(x, w1, b1, w2, b2)
        assert out.shape == x.shape and out.dtype == x.dtype
        assert jnp.allclose(out, ref, atol=1e-5, rtol=1e-5)

    run_case(2, 8, 16, 16)   # HW = 256: lane-dense stores
    run_case(2, 8, 12, 12)   # HW = 144: exercises the unpadded / masked-vst tail path
    print("KERNEL_OK")
</pallas_src>

<mosaic_0001>
module attributes {stable_mosaic.version = 11 : i64} {
  func.func @channel_attention_kernel(%arg0: i32, %arg1: memref<2x8x256xf32, #tpu.memory_space<vmem>>, %arg2: memref<8x7xf32, #tpu.memory_space<vmem>>, %arg3: memref<1x7xf32, #tpu.memory_space<vmem>>, %arg4: memref<7x8xf32, #tpu.memory_space<vmem>>, %arg5: memref<1x8xf32, #tpu.memory_space<vmem>>, %arg6: memref<2x8x256xf32, #tpu.memory_space<vmem>>) attributes {dimension_semantics = [#tpu.dimension_semantics<parallel>], iteration_bounds = array<i64: 1>, scalar_prefetch = 0 : i64, scratch_operands = 0 : i64, tpu.core_type = #tpu.core_type<tc>, window_params = [{transform_indices = @transform_0, window_bounds = array<i64: 2, 8, 256>}, {pipeline_mode = #tpu.pipeline_mode<synchronous>, transform_indices = @transform_1, window_bounds = array<i64: 8, 7>}, {pipeline_mode = #tpu.pipeline_mode<synchronous>, transform_indices = @transform_2, window_bounds = array<i64: 1, 7>}, {pipeline_mode = #tpu.pipeline_mode<synchronous>, transform_indices = @transform_3, window_bounds = array<i64: 7, 8>}, {pipeline_mode = #tpu.pipeline_mode<synchronous>, transform_indices = @transform_4, window_bounds = array<i64: 1, 8>}, {transform_indices = @transform_5, window_bounds = array<i64: 2, 8, 256>}]} {
    %c0 = arith.constant 0 : index
    %c0_0 = arith.constant 0 : index
    %c0_1 = arith.constant 0 : index
    %0 = vector.load %arg1[%c0, %c0_0, %c0_1] : memref<2x8x256xf32, #tpu.memory_space<vmem>>, vector<2x8x256xf32>
    %cst = arith.constant dense<0.000000e+00> : vector<2x8xf32>
    %1 = vector.multi_reduction <add>, %0, %cst [2] : vector<2x8x256xf32> to vector<2x8xf32>
    %cst_2 = arith.constant 3.906250e-03 : f32
    %2 = vector.broadcast %cst_2 : f32 to vector<2x8xf32>
    %3 = arith.mulf %1, %2 : vector<2x8xf32>
    %cst_3 = arith.constant dense<0xFF800000> : vector<2x8xf32>
    %4 = vector.multi_reduction <maximumf>, %0, %cst_3 [2] : vector<2x8x256xf32> to vector<2x8xf32>
    %5 = tpu.concatenate %3, %4 in 0 : vector<2x8xf32>, vector<2x8xf32> -> vector<4x8xf32>
    %c0_4 = arith.constant 0 : index
    %c0_5 = arith.constant 0 : index
    %6 = vector.load %arg2[%c0_4, %c0_5] : memref<8x7xf32, #tpu.memory_space<vmem>>, vector<8x7xf32>
    %cst_6 = arith.constant dense<0.000000e+00> : vector<4x7xf32>
    %7 = tpu.matmul %5, %6, %cst_6 {dimension_numbers = #tpu.dot_dimension_numbers<[1], [0], [0], [1], [0, 0, 1, 1], [], []>} : vector<4x8xf32>, vector<8x7xf32>, vector<4x7xf32> -> vector<4x7xf32>
    %c0_7 = arith.constant 0 : index
    %c0_8 = arith.constant 0 : index
    %8 = vector.load %arg3[%c0_7, %c0_8] : memref<1x7xf32, #tpu.memory_space<vmem>>, vector<1x7xf32>
    %9 = vector.broadcast %8 : vector<1x7xf32> to vector<4x7xf32>
    %10 = arith.addf %7, %9 : vector<4x7xf32>
    %cst_9 = arith.constant 0.000000e+00 : f32
    %11 = vector.broadcast %cst_9 : f32 to vector<4x7xf32>
    %12 = arith.maximumf %10, %11 : vector<4x7xf32>
    %c0_10 = arith.constant 0 : index
    %c0_11 = arith.constant 0 : index
    %13 = vector.load %arg4[%c0_10, %c0_11] : memref<7x8xf32, #tpu.memory_space<vmem>>, vector<7x8xf32>
    %cst_12 = arith.constant dense<0.000000e+00> : vector<4x8xf32>
    %14 = tpu.matmul %12, %13, %cst_12 {dimension_numbers = #tpu.dot_dimension_numbers<[1], [0], [0], [1], [0, 0, 1, 1], [], []>} : vector<4x7xf32>, vector<7x8xf32>, vector<4x8xf32> -> vector<4x8xf32>
    %15 = vector.extract_strided_slice %14 {offsets = [0, 0], sizes = [2, 8], strides = [1, 1]} : vector<4x8xf32> to vector<2x8xf32>
    %16 = vector.extract_strided_slice %14 {offsets = [2, 0], sizes = [2, 8], strides = [1, 1]} : vector<4x8xf32> to vector<2x8xf32>
    %17 = arith.addf %15, %16 : vector<2x8xf32>
    %c0_13 = arith.constant 0 : index
    %c0_14 = arith.constant 0 : index
    %18 = vector.load %arg5[%c0_13, %c0_14] : memref<1x8xf32, #tpu.memory_space<vmem>>, vector<1x8xf32>
    %cst_15 = arith.constant 2.000000e+00 : f32
    %19 = vector.broadcast %cst_15 : f32 to vector<1x8xf32>
    %20 = arith.mulf %19, %18 : vector<1x8xf32>
    %21 = vector.broadcast %20 : vector<1x8xf32> to vector<2x8xf32>
    %22 = arith.addf %17, %21 : vector<2x8xf32>
    %23 = arith.negf %22 : vector<2x8xf32>
    %24 = math.exp %23 : vector<2x8xf32>
    %cst_16 = arith.constant 1.000000e+00 : f32
    %25 = vector.broadcast %cst_16 : f32 to vector<2x8xf32>
    %26 = arith.addf %25, %24 : vector<2x8xf32>
    %27 = arith.divf %25, %26 : vector<2x8xf32>
    %c0_17 = arith.constant 0 : index
    %c0_18 = arith.constant 0 : index
    %c0_19 = arith.constant 0 : index
    %28 = vector.load %arg1[%c0_17, %c0_18, %c0_19] : memref<2x8x256xf32, #tpu.memory_space<vmem>>, vector<2x8x256xf32>
    %29 = vector.shape_cast %27 : vector<2x8xf32> to vector<2x8x1xf32>
    %30 = vector.broadcast %29 : vector<2x8x1xf32> to vector<2x8x256xf32>
    %31 = arith.mulf %28, %30 : vector<2x8x256xf32>
    %c0_20 = arith.constant 0 : index
    %c0_21 = arith.constant 0 : index
    %c0_22 = arith.constant 0 : index
    %32 = vector.load %arg6[%c0_20, %c0_21, %c0_22] : memref<2x8x256xf32, #tpu.memory_space<vmem>>, vector<2x8x256xf32>
    tpu.vector_store %arg6[%c0_20, %c0_21, %c0_22], %31 {strides = array<i32>} : memref<2x8x256xf32, #tpu.memory_space<vmem>>, vector<2x8x256xf32>,
    return
  }
  func.func @transform_0(%arg0: i32) -> (i32, i32, i32) {
    %c0_i32 = arith.constant 0 : i32
    %c0_i32_0 = arith.constant 0 : i32
    %c0_i32_1 = arith.constant 0 : i32
    return %arg0, %c0_i32, %c0_i32_0 : i32, i32, i32
  }
  func.func @transform_1(%arg0: i32) -> (i32, i32) {
    %c0_i32 = arith.constant 0 : i32
    %c0_i32_0 = arith.constant 0 : i32
    %c0_i32_1 = arith.constant 0 : i32
    return %c0_i32, %c0_i32_0 : i32, i32
  }
  func.func @transform_2(%arg0: i32) -> (i32, i32) {
    %c0_i32 = arith.constant 0 : i32
    %c0_i32_0 = arith.constant 0 : i32
    %c0_i32_1 = arith.constant 0 : i32
    return %c0_i32, %c0_i32_0 : i32, i32
  }
  func.func @transform_3(%arg0: i32) -> (i32, i32) {
    %c0_i32 = arith.constant 0 : i32
    %c0_i32_0 = arith.constant 0 : i32
    %c0_i32_1 = arith.constant 0 : i32
    return %c0_i32, %c0_i32_0 : i32, i32
  }
  func.func @transform_4(%arg0: i32) -> (i32, i32) {
    %c0_i32 = arith.constant 0 : i32
    %c0_i32_0 = arith.constant 0 : i32
    %c0_i32_1 = arith.constant 0 : i32
    return %c0_i32, %c0_i32_0 : i32, i32
  }
  func.func @transform_5(%arg0: i32) -> (i32, i32, i32) {
    %c0_i32 = arith.constant 0 : i32
    %c0_i32_0 = arith.constant 0 : i32
    %c0_i32_1 = arith.constant 0 : i32
    return %arg0, %c0_i32, %c0_i32_0 : i32, i32, i32
  }
}

</mosaic_0001>

<llo_original>
// kernel: tpu_custom_call.1
$region0: #{tpu_custom_call.1}
  #allocation0 [shape = 'u32[]', space=smem, size = 0x4, offset = 0x4, fixed_abs, tag = 'smem constant byte address 0x4 - core index']
  #allocation1 [shape = 'u32[144,128]{1,0:T(1,128)}', space=vmem, size = 0x12000, scoped, tag = 'internal scratch']
  %s0 = inlined_call_operand.hbm [shape: f32[2,8,256], index: 0, kind: input, shape index: {}]
  %s1 = inlined_call_operand.hbm [shape: f32[8,7], index: 1, kind: input, shape index: {}]
  %s2 = inlined_call_operand.vmem [shape: f32[1,7], index: 2, kind: input, shape index: {}]
  %s3 = inlined_call_operand.vmem [shape: f32[7,8], index: 3, kind: input, shape index: {}]
  %s4 = inlined_call_operand.vmem [shape: f32[1,8], index: 4, kind: input, shape index: {}]
  %s5 = inlined_call_operand.hbm [shape: f32[2,8,256], index: 5, kind: output, shape index: {}]
  %s6 = sld [smem:[#allocation0]]
  $region38: #{tpu_custom_call.1} parent=0
    _
  %s8 = ssub.s32 1, %s6
  %s9 = scalar_select 0, %s8, %s6
  $region1: #{tpu_custom_call.1} parent=0
    #allocation2 [shape = 'u8[16384]{0}', space=vmem, size = 0x4000, scoped, tag = 'input window, operand 0, single buffered']
    #allocation3 [shape = 's32[1]{0}', space=sflag, size = 0x4, scoped, tag = 'scoped memory for tpu_custom_call.1']
    #allocation4 [shape = 's32[1]{0}', space=sflag, size = 0x4, scoped, tag = 'scoped memory for tpu_custom_call.1']
    #allocation5 [shape = 'u8[4096]{0}', space=vmem, size = 0x1000, scoped, tag = 'input window, operand 1, single buffered']
    #allocation6 [shape = 's32[1]{0}', space=sflag, size = 0x4, scoped, tag = 'scoped memory for tpu_custom_call.1']
    #allocation7 [shape = 'u8[16384]{0}', space=vmem, size = 0x4000, scoped, tag = 'output window, operand 0, single buffered']
    %10 = vsyncpa [#allocation3], 0
    %11 = vsyncpa [#allocation6], 0
    %12 = vsyncpa [#allocation4], 0
    // Predicated region
    $region2: #{tpu_custom_call.1} parent=1 // pred_check
      _
    $region3: #{tpu_custom_call.1} parent=1 // pred_check_branch
      %14 = sbr.rel (0) target = $region5
    $region4: #{tpu_custom_call.1} parent=1 // pred_region
      %s16 = ssub.s32 512, 512
      %17 = vsyncadd [#allocation3], %s16
      %s18 = sshll.u32 [#allocation2], 4
      %s19 = int_to_ptr.vmem [resolvable:$true] %s18
      %24 = dma.hbm_to_vmem [thread:$0]  %s0, 512, %s19, [#allocation3], 256, 256, 16
    $region5: #{tpu_custom_call.1} parent=1 // pred_fallthru
      _
    // Predicated region
    $region6: #{tpu_custom_call.1} parent=1 // pred_check
      _
    $region7: #{tpu_custom_call.1} parent=1 // pred_check_branch
      %26 = sbr.rel (0) target = $region9
    $region8: #{tpu_custom_call.1} parent=1 // pred_region
      %s28 = ssub.s32 128, 128
      %29 = vsyncadd [#allocation6], %s28
      %s31 = sshll.u32 [#allocation5], 4
      %s32 = int_to_ptr.vmem [resolvable:$true] %s31
      %34 = dma.hbm_to_vmem [thread:$0]  %s1, 128, %s32, [#allocation6]
    $region9: #{tpu_custom_call.1} parent=1 // pred_fallthru
      _
    // Predicated region
    $region10: #{tpu_custom_call.1} parent=1 // pred_check
      _
    $region11: #{tpu_custom_call.1} parent=1 // pred_check_branch
      %36 = sbr.rel (0) target = $region13
    $region12: #{tpu_custom_call.1} parent=1 // pred_region
      _
    $region13: #{tpu_custom_call.1} parent=1 // pred_fallthru
      _
    // Predicated region
    $region14: #{tpu_custom_call.1} parent=1 // pred_check
      _
    $region15: #{tpu_custom_call.1} parent=1 // pred_check_branch
      %38 = sbr.rel (0) target = $region17
    $region16: #{tpu_custom_call.1} parent=1 // pred_region
      _
    $region17: #{tpu_custom_call.1} parent=1 // pred_fallthru
      _
    // Predicated region
    $region18: #{tpu_custom_call.1} parent=1 // pred_check
      _
    $region19: #{tpu_custom_call.1} parent=1 // pred_check_branch
      %40 = sbr.rel (0) target = $region21
    $region20: #{tpu_custom_call.1} parent=1 // pred_region
      _
    $region21: #{tpu_custom_call.1} parent=1 // pred_fallthru
      _
    // Predicated region
    $region22: #{tpu_custom_call.1} parent=1 // pred_check
      _
    $region23: #{tpu_custom_call.1} parent=1 // pred_check_branch
      %42 = sbr.rel (0) target = $region25
    $region24: #{tpu_custom_call.1} parent=1 // pred_region
      %43 = dma.done [#allocation3], 512
    $region25: #{tpu_custom_call.1} parent=1 // pred_fallthru
      _
    // Predicated region
    $region26: #{tpu_custom_call.1} parent=1 // pred_check
      _
    $region27: #{tpu_custom_call.1} parent=1 // pred_check_branch
      %45 = sbr.rel (0) target = $region29
    $region28: #{tpu_custom_call.1} parent=1 // pred_region
      %46 = dma.done [#allocation6], 128
    $region29: #{tpu_custom_call.1} parent=1 // pred_fallthru
      _
    %v47 = vld [vmem:[#allocation2] sm:$0xff]
    %v48 = vld [vmem:[#allocation2 + $0x8] sm:$0xff]
    %v49 = vld [vmem:[#allocation2 + $0x10] sm:$0xff]
    %v50 = vld [vmem:[#allocation2 + $0x18] sm:$0xff]
    %v51 = vadd.f32 %v47, %v48
    %52 = vadd.xlane.f32.xlu0 %v51
    %v53 = vpop.xlane.xlu0 %52
    %v54 = vadd.f32 %v49, %v50
    %55 = vadd.xlane.f32.xlu0 %v54
    %v56 = vpop.xlane.xlu0 %55
    %v57 = vmul.f32 %v53, 0.00390625
    %v58 = vmul.f32 %v56, 0.00390625
    %v59 = vmax.f32 %v47, %v48
    %60 = vmax.xlane.f32.xlu0 %v59
    %v61 = vpop.xlane.xlu0 %60
    %v62 = vmax.f32 %v49, %v50
    %63 = vmax.xlane.f32.xlu0 %v62
    %v64 = vpop.xlane.xlu0 %63
    %v67 = vlaneseq
    %v68 = vand.u32 %v67, 127
    %v69 = vlaneseq
    %v70 = vshrl.u32 %v69, 7
    %v71 = vsub.s32 %v68, %v70
    %v72 = vrot.slane %v57, %v71
    %v73 = vlaneseq
    %v74 = vshrl.u32 %v73, 7
    %v75 = vsub.s32 %v68, %v74
    %v76 = vrot.slane %v58, %v75
    %vm77 = vcmask 1041409
    %v78 = vsel %vm77, %v76, %v72
    %v82 = vlaneseq
    %v83 = vshrl.u32 %v82, 7
    %v84 = vsub.s32 %v68, %v83
    %v85 = vrot.slane %v61, %v84
    %v86 = vlaneseq
    %v87 = vshrl.u32 %v86, 7
    %v88 = vsub.s32 %v68, %v87
    %v89 = vrot.slane %v64, %v88
    %vm90 = vcmask 1043459
    %v91 = vsel %vm90, %v89, %v85
    %vm93 = vcmask 1041408
    %v94 = vsel %vm93, %v78, %v91
    %v95 = vld [vmem:[#allocation5] sm:$0xff]
    %v96 = vld [vmem:[%s2] sm:$0x1]
    %v98 = vlaneseq
    %v99 = vshrl.u32 %v98, 7
    %v100 = vsub.s32 0, %v99
    %v101 = vrot.slane %v96, %v100
    %vm103 = vcmask 64512
    %v105 = vsel %vm103, %v94, 0
    %107 = vmatprep.subr.mxu0 0.0
    %108 = vmatpush1.msra.mxu0 %v95
    %109 = vmatprep.subr.mxu0 0.0
    %110 = vmatpush1.msra.mxu0 0.0
    %111 = vmatprep.subr.mxu0 0.0
    %112 = vmatpush1.msra.mxu0 0.0
    %113 = vmatprep.subr.mxu0 0.0
    %114 = vmatpush1.msra.mxu0 0.0
    %115 = vmatprep.subr.mxu0 0.0
    %116 = vmatpush1.msra.mxu0 0.0
    %117 = vmatprep.subr.mxu0 0.0
    %118 = vmatpush1.msra.mxu0 0.0
    %119 = vmatprep.subr.mxu0 0.0
    %120 = vmatpush1.msra.mxu0 0.0
    %121 = vmatprep.subr.mxu0 0.0
    %122 = vmatpush1.msra.mxu0 0.0
    %123 = vmatprep.subr.mxu0 0.0
    %124 = vmatpush1.msra.mxu0 0.0
    %125 = vmatprep.subr.mxu0 0.0
    %126 = vmatpush1.msra.mxu0 0.0
    %127 = vmatprep.subr.mxu0 0.0
    %128 = vmatpush1.msra.mxu0 0.0
    %129 = vmatprep.subr.mxu0 0.0
    %130 = vmatpush1.msra.mxu0 0.0
    %131 = vmatprep.subr.mxu0 0.0
    %132 = vmatpush1.msra.mxu0 0.0
    %133 = vmatprep.subr.mxu0 0.0
    %134 = vmatpush1.msra.mxu0 0.0
    %135 = vmatprep.subr.mxu0 0.0
    %136 = vmatpush1.msra.mxu0 0.0
    %137 = vmatprep.subr.mxu0 0.0
    %138 = vmatpush1.msra.mxu0 0.0
    %139 = vmatprep.subr.mxu0 0.0
    %140 = vmatpush1.msra.mxu0 0.0
    %141 = vmatprep.subr.mxu0 0.0
    %142 = vmatpush1.msra.mxu0 0.0
    %143 = vmatprep.subr.mxu0 0.0
    %144 = vmatpush1.msra.mxu0 0.0
    %145 = vmatprep.subr.mxu0 0.0
    %146 = vmatpush1.msra.mxu0 0.0
    %147 = vmatprep.subr.mxu0 0.0
    %148 = vmatpush1.msra.mxu0 0.0
    %149 = vmatprep.subr.mxu0 0.0
    %150 = vmatpush1.msra.mxu0 0.0
    %151 = vmatprep.subr.mxu0 0.0
    %152 = vmatpush1.msra.mxu0 0.0
    %153 = vmatprep.subr.mxu0 0.0
    %154 = vmatpush1.msra.mxu0 0.0
    %155 = vmatprep.subr.mxu0 0.0
    %156 = vmatpush1.msra.mxu0 0.0
    %157 = vmatprep.subr.mxu0 0.0
    %158 = vmatpush1.msra.mxu0 0.0
    %159 = vmatprep.subr.mxu0 0.0
    %160 = vmatpush1.msra.mxu0 0.0
    %161 = vmatprep.subr.mxu0 0.0
    %162 = vmatpush1.msra.mxu0 0.0
    %163 = vmatprep.subr.mxu0 0.0
    %164 = vmatpush1.msra.mxu0 0.0
    %165 = vmatprep.subr.mxu0 0.0
    %166 = vmatpush1.msra.mxu0 0.0
    %167 = vmatprep.subr.mxu0 0.0
    %168 = vmatpush1.msra.mxu0 0.0
    %169 = vmatprep.subr.mxu0 0.0
    %170 = vmatpush1.msra.mxu0 0.0
    %171 = vmatprep.mubr.f32.mxu0 0.0
    %172 = vmatmul.mubr.f32.gmra.mrb[0].mxu0 %v105
    %v173 = vpop.f32.mrb[0].mxu0
    %v174 = vadd.f32 %v101, %v173
    %v175 = vpop.f32.mrb[0].mxu0
    %176 = vdwg.mxu0
    %v177 = vmax.f32 %v174, 0.0
    %v178 = vld [vmem:[%s3] sm:$0x7f]
    %vm179 = vcmask 56320
    %v181 = vsel %vm179, %v177, 0
    %vm183 = vcmask 1046528
    %v185 = vsel %vm183, %v178, 0
    %187 = vmatprep.subr.mxu0 0.0
    %188 = vmatpush1.msra.mxu0 %v185
    %189 = vmatprep.subr.mxu0 0.0
    %190 = vmatpush1.msra.mxu0 0.0
    %191 = vmatprep.subr.mxu0 0.0
    %192 = vmatpush1.msra.mxu0 0.0
    %193 = vmatprep.subr.mxu0 0.0
    %194 = vmatpush1.msra.mxu0 0.0
    %195 = vmatprep.subr.mxu0 0.0
    %196 = vmatpush1.msra.mxu0 0.0
    %197 = vmatprep.subr.mxu0 0.0
    %198 = vmatpush1.msra.mxu0 0.0
    %199 = vmatprep.subr.mxu0 0.0
    %200 = vmatpush1.msra.mxu0 0.0
    %201 = vmatprep.subr.mxu0 0.0
    %202 = vmatpush1.msra.mxu0 0.0
    %203 = vmatprep.subr.mxu0 0.0
    %204 = vmatpush1.msra.mxu0 0.0
    %205 = vmatprep.subr.mxu0 0.0
    %206 = vmatpush1.msra.mxu0 0.0
    %207 = vmatprep.subr.mxu0 0.0
    %208 = vmatpush1.msra.mxu0 0.0
    %209 = vmatprep.subr.mxu0 0.0
    %210 = vmatpush1.msra.mxu0 0.0
    %211 = vmatprep.subr.mxu0 0.0
    %212 = vmatpush1.msra.mxu0 0.0
    %213 = vmatprep.subr.mxu0 0.0
    %214 = vmatpush1.msra.mxu0 0.0
    %215 = vmatprep.subr.mxu0 0.0
    %216 = vmatpush1.msra.mxu0 0.0
    %217 = vmatprep.subr.mxu0 0.0
    %218 = vmatpush1.msra.mxu0 0.0
    %219 = vmatprep.subr.mxu0 0.0
    %220 = vmatpush1.msra.mxu0 0.0
    %221 = vmatprep.subr.mxu0 0.0
    %222 = vmatpush1.msra.mxu0 0.0
    %223 = vmatprep.subr.mxu0 0.0
    %224 = vmatpush1.msra.mxu0 0.0
    %225 = vmatprep.subr.mxu0 0.0
    %226 = vmatpush1.msra.mxu0 0.0
    %227 = vmatprep.subr.mxu0 0.0
    %228 = vmatpush1.msra.mxu0 0.0
    %229 = vmatprep.subr.mxu0 0.0
    %230 = vmatpush1.msra.mxu0 0.0
    %231 = vmatprep.subr.mxu0 0.0
    %232 = vmatpush1.msra.mxu0 0.0
    %233 = vmatprep.subr.mxu0 0.0
    %234 = vmatpush1.msra.mxu0 0.0
    %235 = vmatprep.subr.mxu0 0.0
    %236 = vmatpush1.msra.mxu0 0.0
    %237 = vmatprep.subr.mxu0 0.0
    %238 = vmatpush1.msra.mxu0 0.0
    %239 = vmatprep.subr.mxu0 0.0
    %240 = vmatpush1.msra.mxu0 0.0
    %241 = vmatprep.subr.mxu0 0.0
    %242 = vmatpush1.msra.mxu0 0.0
    %243 = vmatprep.subr.mxu0 0.0
    %244 = vmatpush1.msra.mxu0 0.0
    %245 = vmatprep.subr.mxu0 0.0
    %246 = vmatpush1.msra.mxu0 0.0
    %247 = vmatprep.subr.mxu0 0.0
    %248 = vmatpush1.msra.mxu0 0.0
    %249 = vmatprep.subr.mxu0 0.0
    %250 = vmatpush1.msra.mxu0 0.0
    %251 = vmatprep.mubr.f32.mxu0 0.0
    %252 = vmatmul.mubr.f32.gmra.mrb[0].mxu0 %v181
    %v253 = vpop.f32.mrb[0].mxu0
    %v254 = vadd.f32 0.0, %v253
    %v255 = vpop.f32.mrb[0].mxu0
    %256 = vdwg.mxu0
    %v258 = vrot.slane %v254, 2
    %v260 = vadd.f32 %v254, %v258
    %v261 = vld [vmem:[%s4] sm:$0x1]
    %v262 = vmul.f32 %v261, 2.0
    %v264 = vlaneseq
    %v265 = vshrl.u32 %v264, 7
    %v266 = vsub.s32 0, %v265
    %v267 = vrot.slane %v262, %v266
    %v269 = vadd.f32 %v260, %v267
    %v270 = vxor.u32 %v269, 2147483648
    %v271 = vmul.f32 %v270, 1.442695
    %v272 = vpow.pop %v271
    %v273 = vadd.f32 %v272, 1.0
    %v274 = vrcp.pop %v273
    %v275 = vmul.f32 1.0, %v274
    %v276 = vlaneseq
    %v277 = vshrl.u32 %v276, 7
    %v278 = vsub.s32 0, %v277
    %v279 = vrot.slane %v275, %v278
    %281 = vbcast.lane.b32.xlu0 %v279, 256
    %v282 = vpop.permute.xlu0 %281
    %v283 = vlaneseq
    %v284 = vshrl.u32 %v283, 7
    %v285 = vsub.s32 1, %v284
    %v286 = vrot.slane %v275, %v285
    %288 = vbcast.lane.b32.xlu0 %v286, 256
    %v289 = vpop.permute.xlu0 %288
    %v290 = vmul.f32 %v47, %v282
    %v291 = vmul.f32 %v48, %v282
    %v292 = vmul.f32 %v49, %v289
    %v293 = vmul.f32 %v50, %v289
    %294 = vst [vmem:[#allocation7] sm:$0xff] %v290
    %295 = vst [vmem:[#allocation7 + $0x8] sm:$0xff] %v291
    %296 = vst [vmem:[#allocation7 + $0x10] sm:$0xff] %v292
    %297 = vst [vmem:[#allocation7 + $0x18] sm:$0xff] %v293
    // Predicated region
    $region30: #{tpu_custom_call.1} parent=1 // pred_check
      _
    $region31: #{tpu_custom_call.1} parent=1 // pred_check_branch
      %299 = sbr.rel (0) target = $region33
    $region32: #{tpu_custom_call.1} parent=1 // pred_region
      %s301 = ssub.s32 512, 512
      %302 = vsyncadd [#allocation4], %s301
      %s303 = sshll.u32 [#allocation7], 4
      %s304 = int_to_ptr.vmem [resolvable:$true] %s303
      %309 = dma.vmem_to_hbm [thread:$0]  %s304, 512, %s5, [#allocation4], 256, 256, 16
    $region33: #{tpu_custom_call.1} parent=1 // pred_fallthru
      _
    // Predicated region
    $region34: #{tpu_custom_call.1} parent=1 // pred_check
      _
    $region35: #{tpu_custom_call.1} parent=1 // pred_check_branch
      %311 = sbr.rel (0) target = $region37
    $region36: #{tpu_custom_call.1} parent=1 // pred_region
      %312 = dma.done [#allocation4], 512
    $region37: #{tpu_custom_call.1} parent=1 // pred_fallthru
      _
    %313 = vsyncpa [#allocation3], 1
    %314 = vsyncpa [#allocation6], 1
    %315 = vsyncpa [#allocation4], 1

</llo_original>
